<compile_context>
chip_gen: v6e
topology: v6e:2x2x1
jax: 0.10.0
libtpu: 0.0.40
codegen_flags: <defaults>
</compile_context>

<pallas_src>
import functools

import jax
import jax.numpy as jnp
from jax.experimental import pallas as pl
from jax.experimental.pallas import tpu as pltpu


_LANE = 128  # output vreg lane width


def _round_down(x, m):
    return (x // m) * m


def _round_up(x, m):
    return ((x + m - 1) // m) * m


def _vmem_capacity_bytes():
    """Physical VMEM per TensorCore; conservative fallback if query fails."""
    try:
        cap = int(pltpu.get_tpu_info().vmem_capacity_bytes)
        if cap > 0:
            return cap
    except Exception:
        pass
    return 64 * 1024 * 1024  # v7x per-TC capacity (smallest across generations)


def _block_bytes_per_row(c, itemsize):
    # 2 double-buffered native-dtype logits blocks + ~3 f32 intermediates
    # (x upcast, exp, select temp) per row, plus targets/alpha/output slivers.
    return c * (2 * itemsize + 3 * 4) + 32


def _pick_block_rows(n, c, itemsize, vmem_budget):
    """Dtype-aware tile size: big enough to amortize the ~0.35us per-step cost,
    small enough to fit the VMEM budget, rounded to the packed-sublane granule,
    and capped so big-N launches have >= 4 grid steps (v7x has 2 TensorCores)."""
    granule = max(8, 32 // itemsize)             # 8 for f32, 16 for bf16, 32 for int8
    rows = vmem_budget // _block_bytes_per_row(c, itemsize)
    rows = max(granule, _round_down(rows, granule))
    if n >= 1024:
        # Keep at least ~4 grid steps so both v7x TensorCores get work; skipped for
        # small N where extra grid steps would just add fixed per-step overhead.
        rows = min(rows, max(granule, _round_up(pl.cdiv(n, 4), granule)))
    if rows >= n:
        rows = n                                  # block == full dim is always legal
    return rows


def _focal_kernel(x_ref, t_ref, a_ref, out_ref, *, gamma, n_total, block_rows, exp_dtype):
    """One (bn, C) tile of logits -> one per-tile partial loss sum (lane 0 of a
    (1, 128) output block). Classes stay on the lane axis; logits arrive in their
    native dtype and are upcast to f32 after the VMEM load."""
    x = x_ref[...].astype(jnp.float32)            # (bn, C)
    t = t_ref[...]                                # (bn, 1) int32 targets
    a = a_ref[...]                                # (bn, 1) f32 per-sample alpha
    bn, c = x.shape

    onehot = jax.lax.broadcasted_iota(jnp.int32, (bn, c), 1) == t          # (bn, C)

    # Softmax numerator statistics only — no full (bn, C) softmax materialized.
    m = jnp.max(x, axis=1, keepdims=True)                                   # (bn, 1)
    xm = x - m
    if exp_dtype is not None:
        # bf16 exp on the EUP (v6e/v7x trim); accumulate in f32.
        e = jnp.exp(xm.astype(exp_dtype)).astype(jnp.float32)               # (bn, C)
    else:
        e = jnp.exp(xm)                                                     # (bn, C)
    s = jnp.sum(e, axis=1, keepdims=True)                                   # (bn, 1)
    e_t = jnp.sum(jnp.where(onehot, e, 0.0), axis=1, keepdims=True)         # (bn, 1)

    # Per-sample loss (divide only on the (bn, 1) vector, not the (bn, C) block).
    probs = e_t / s + 1e-5
    log_p = jnp.log(probs)
    base = 1.0 - probs
    if gamma == 0.0:
        w = 1.0
    elif gamma == 1.0:
        w = base
    elif gamma == 2.0:
        w = base * base
    else:
        # probs can exceed 1 by ~1e-5; clamp so fractional gamma does not NaN
        # (the PyTorch reference would NaN here — deliberate deviation).
        w = jnp.power(jnp.maximum(base, 0.0), gamma)
    loss = -a * w * log_p                                                   # (bn, 1)

    # Mask rows past N in the (possibly partial) last tile BEFORE summing, so
    # garbage in the padded region never contaminates the partial sum.
    row = jax.lax.broadcasted_iota(jnp.int32, (bn, 1), 0) + pl.program_id(0) * block_rows
    loss = jnp.where(row < n_total, loss, 0.0)
    tile_sum = jnp.sum(loss)

    # Lane-dense (1, 128) writeback: partial sum in lane 0, zeros elsewhere, so the
    # wrapper can reduce the tiny partials array with a plain jnp.sum.
    lane = jax.lax.broadcasted_iota(jnp.int32, (1, _LANE), 1)
    out_ref[...] = jnp.where(lane == 0, tile_sum, 0.0)


def focal_loss(inputs, targets, alpha, *, gamma=1.0, size_average=True,
               block_n=None, exp_dtype=None):
    """inputs: (N, C) float logits (any float dtype, streamed in native dtype);
    targets: (N,) int class ids; alpha: (C,) or (C, 1) per-class weights.
    exp_dtype=jnp.bfloat16 enables the bf16-exp trim (v6e/v7x); default f32."""
    n, c = inputs.shape
    t = targets.reshape(-1).astype(jnp.int32)
    # Per-sample alpha gathered in the wrapper (tiny gather) so the kernel does
    # not spend a (bn, C) select + cross-lane reduce per tile on it.
    a_t = alpha.reshape(-1).astype(jnp.float32)[t].reshape(n, 1)
    gamma = float(gamma)

    itemsize = jnp.dtype(inputs.dtype).itemsize
    vmem_cap = _vmem_capacity_bytes()
    vmem_budget = vmem_cap // 8                   # ~16 MiB on v5e/v6e, ~8 MiB on v7x
    bn = block_n if block_n is not None else _pick_block_rows(n, c, itemsize, vmem_budget)
    bn = min(bn, n)
    num_tiles = pl.cdiv(n, bn)

    # Explicit scoped-VMEM limit derived from the actual block footprint + margin,
    # capped at half the physical capacity (headroom on v7x's 64 MiB).
    peak = bn * _block_bytes_per_row(c, itemsize) + (64 << 10)
    vmem_limit = min(max(2 * peak, 16 << 20), vmem_cap // 2)

    kernel = functools.partial(_focal_kernel, gamma=gamma, n_total=n,
                               block_rows=bn, exp_dtype=exp_dtype)

    partials = pl.pallas_call(
        kernel,
        grid=(num_tiles,),
        out_shape=jax.ShapeDtypeStruct((1, num_tiles * _LANE), jnp.float32),
        in_specs=[
            pl.BlockSpec((bn, c), lambda i: (i, 0)),   # logits, native dtype, (N, C) layout
            pl.BlockSpec((bn, 1), lambda i: (i, 0)),   # targets
            pl.BlockSpec((bn, 1), lambda i: (i, 0)),   # per-sample alpha
        ],
        out_specs=pl.BlockSpec((1, _LANE), lambda i: (0, i)),
        compiler_params=pltpu.CompilerParams(
            dimension_semantics=("parallel",),
            vmem_limit_bytes=int(vmem_limit),
        ),
    )(inputs, t.reshape(n, 1), a_t)

    # Tiny reduction over num_tiles*128 floats (partial sum in lane 0 per tile).
    total = jnp.sum(partials)
    return total / jnp.float32(n) if size_average else total


def _focal_loss_ref(inputs, targets, alpha, *, gamma=1.0, size_average=True):
    # Pure-JAX reference mirroring the PyTorch forward.
    n, c = inputs.shape
    p = jax.nn.softmax(inputs.astype(jnp.float32), axis=1)
    mask = jax.nn.one_hot(targets, c, dtype=jnp.float32)
    probs = jnp.sum(p * mask, axis=1, keepdims=True) + 1e-5
    a = alpha.reshape(-1)[targets].reshape(n, 1).astype(jnp.float32)
    log_p = jnp.log(probs)
    bl = -a * jnp.power(1.0 - probs, gamma) * log_p
    return jnp.mean(bl) if size_average else jnp.sum(bl)


if __name__ == "__main__":
    key = jax.random.PRNGKey(0)
    k1, k2, k3, k4, k5, k6 = jax.random.split(key, 6)

    # Case 1: module defaults (class_num=5, alpha=ones(5,1), gamma=1, size_average=True).
    n1, c1 = 8, 5
    x1 = jax.random.normal(k1, (n1, c1), dtype=jnp.float32)
    t1 = jax.random.randint(k2, (n1,), 0, c1, dtype=jnp.int32)
    a1 = jnp.ones((c1, 1), dtype=jnp.float32)
    out1 = jax.block_until_ready(focal_loss(x1, t1, a1, gamma=1.0, size_average=True))
    ref1 = _focal_loss_ref(x1, t1, a1, gamma=1.0, size_average=True)
    assert jnp.allclose(out1, ref1, rtol=1e-5, atol=1e-6), (out1, ref1)

    # Case 2: small-C path straight from (N, C) HBM (no wrapper transpose),
    # multi-tile grid with a masked partial last tile, gamma=2, sum reduction.
    n2, c2 = 300, 5
    x2 = jax.random.normal(k3, (n2, c2), dtype=jnp.float32)
    t2 = jax.random.randint(k4, (n2,), 0, c2, dtype=jnp.int32)
    a2 = jax.random.uniform(k5, (c2, 1), dtype=jnp.float32) + 0.5
    out2 = jax.block_until_ready(
        focal_loss(x2, t2, a2, gamma=2.0, size_average=False, block_n=128))
    ref2 = _focal_loss_ref(x2, t2, a2, gamma=2.0, size_average=False)
    assert jnp.allclose(out2, ref2, rtol=1e-5, atol=1e-5), (out2, ref2)

    # Case 3: C >= 128, bf16 logits kept in their native dtype through HBM,
    # multi-tile grid with a masked partial last tile.
    n3, c3 = 40, 128
    x3 = jax.random.normal(k6, (n3, c3), dtype=jnp.float32).astype(jnp.bfloat16)
    t3 = jax.random.randint(k2, (n3,), 0, c3, dtype=jnp.int32)
    a3 = jnp.ones((c3, 1), dtype=jnp.float32)
    out3 = jax.block_until_ready(
        focal_loss(x3, t3, a3, gamma=1.0, size_average=True, block_n=16))
    ref3 = _focal_loss_ref(x3.astype(jnp.float32), t3, a3, gamma=1.0, size_average=True)
    assert jnp.allclose(out3, ref3, rtol=1e-4, atol=1e-5), (out3, ref3)

    # Case 4: optional bf16-exp trim (v6e/v7x); numerics loosen to ~1e-2 level.
    out4 = jax.block_until_ready(
        focal_loss(x2, t2, a2, gamma=2.0, size_average=True, block_n=128,
                   exp_dtype=jnp.bfloat16))
    ref4 = _focal_loss_ref(x2, t2, a2, gamma=2.0, size_average=True)
    assert jnp.allclose(out4, ref4, rtol=5e-2, atol=2e-2), (out4, ref4)

    print("KERNEL_OK")
</pallas_src>

<mosaic_0001>
module attributes {stable_mosaic.version = 11 : i64} {
  func.func @_focal_kernel(%arg0: i32, %arg1: memref<8x5xf32, #tpu.memory_space<vmem>>, %arg2: memref<8x1xi32, #tpu.memory_space<vmem>>, %arg3: memref<8x1xf32, #tpu.memory_space<vmem>>, %arg4: memref<1x128xf32, #tpu.memory_space<vmem>>) attributes {dimension_semantics = [#tpu.dimension_semantics<parallel>], iteration_bounds = array<i64: 1>, scalar_prefetch = 0 : i64, scratch_operands = 0 : i64, tpu.core_type = #tpu.core_type<tc>, window_params = [{transform_indices = @transform_0, window_bounds = array<i64: 8, 5>}, {transform_indices = @transform_1, window_bounds = array<i64: 8, 1>}, {transform_indices = @transform_2, window_bounds = array<i64: 8, 1>}, {transform_indices = @transform_3, window_bounds = array<i64: 1, 128>}]} {
    %c0 = arith.constant 0 : index
    %c0_0 = arith.constant 0 : index
    %0 = vector.load %arg1[%c0, %c0_0] : memref<8x5xf32, #tpu.memory_space<vmem>>, vector<8x5xf32>
    %c0_1 = arith.constant 0 : index
    %c0_2 = arith.constant 0 : index
    %1 = vector.load %arg2[%c0_1, %c0_2] : memref<8x1xi32, #tpu.memory_space<vmem>>, vector<8x1xi32>
    %c0_3 = arith.constant 0 : index
    %c0_4 = arith.constant 0 : index
    %2 = vector.load %arg3[%c0_3, %c0_4] : memref<8x1xf32, #tpu.memory_space<vmem>>, vector<8x1xf32>
    %3 = tpu.iota {dimensions = array<i32: 1>} : vector<8x5xi32>
    %4 = vector.broadcast %1 : vector<8x1xi32> to vector<8x5xi32>
    %5 = arith.cmpi eq, %3, %4 : vector<8x5xi32>
    %cst = arith.constant dense<0xFF800000> : vector<8xf32>
    %6 = vector.multi_reduction <maximumf>, %0, %cst [1] : vector<8x5xf32> to vector<8xf32>
    %7 = vector.shape_cast %6 : vector<8xf32> to vector<8x1xf32>
    %8 = vector.broadcast %7 : vector<8x1xf32> to vector<8x5xf32>
    %9 = arith.subf %0, %8 : vector<8x5xf32>
    %10 = math.exp %9 : vector<8x5xf32>
    %cst_5 = arith.constant dense<0.000000e+00> : vector<8xf32>
    %11 = vector.multi_reduction <add>, %10, %cst_5 [1] : vector<8x5xf32> to vector<8xf32>
    %12 = vector.shape_cast %11 : vector<8xf32> to vector<8x1xf32>
    %cst_6 = arith.constant 0.000000e+00 : f32
    %13 = vector.broadcast %cst_6 : f32 to vector<8x5xf32>
    %14 = arith.select %5, %10, %13 : vector<8x5xi1>, vector<8x5xf32>
    %cst_7 = arith.constant dense<0.000000e+00> : vector<8xf32>
    %15 = vector.multi_reduction <add>, %14, %cst_7 [1] : vector<8x5xf32> to vector<8xf32>
    %16 = vector.shape_cast %15 : vector<8xf32> to vector<8x1xf32>
    %17 = arith.divf %16, %12 : vector<8x1xf32>
    %cst_8 = arith.constant 9.99999974E-6 : f32
    %18 = vector.broadcast %cst_8 : f32 to vector<8x1xf32>
    %19 = arith.addf %17, %18 : vector<8x1xf32>
    %20 = math.log %19 : vector<8x1xf32>
    %cst_9 = arith.constant 1.000000e+00 : f32
    %21 = vector.broadcast %cst_9 : f32 to vector<8x1xf32>
    %22 = arith.subf %21, %19 : vector<8x1xf32>
    %cst_10 = arith.constant 0.000000e+00 : f32
    %23 = vector.broadcast %cst_10 : f32 to vector<8x1xf32>
    %24 = arith.subf %23, %2 : vector<8x1xf32>
    %25 = arith.mulf %24, %22 : vector<8x1xf32>
    %26 = arith.mulf %25, %20 : vector<8x1xf32>
    %27 = tpu.iota {dimensions = array<i32: 0>} : vector<8x1xi32>
    %c8_i32 = arith.constant 8 : i32
    %28 = arith.muli %arg0, %c8_i32 : i32
    %29 = vector.broadcast %28 : i32 to vector<8x1xi32>
    %30 = arith.addi %27, %29 : vector<8x1xi32>
    %c8_i32_11 = arith.constant 8 : i32
    %31 = vector.broadcast %c8_i32_11 : i32 to vector<8x1xi32>
    %32 = arith.cmpi slt, %30, %31 : vector<8x1xi32>
    %cst_12 = arith.constant 0.000000e+00 : f32
    %33 = vector.broadcast %cst_12 : f32 to vector<8x1xf32>
    %34 = arith.select %32, %26, %33 : vector<8x1xi1>, vector<8x1xf32>
    %35 = vector.shape_cast %34 : vector<8x1xf32> to vector<1x8x1xf32>
    %cst_13 = arith.constant dense<0.000000e+00> : vector<1xf32>
    %36 = vector.multi_reduction <add>, %35, %cst_13 [1, 2] : vector<1x8x1xf32> to vector<1xf32>
    %37 = vector.shape_cast %36 : vector<1xf32> to vector<1x1x1xf32>
    %38 = vector.extract %37[0, 0, 0] : f32 from vector<1x1x1xf32>
    %39 = tpu.iota {dimensions = array<i32: 1>} : vector<1x128xi32>
    %c0_i32 = arith.constant 0 : i32
    %40 = vector.broadcast %c0_i32 : i32 to vector<1x128xi32>
    %41 = arith.cmpi eq, %39, %40 : vector<1x128xi32>
    %cst_14 = arith.constant 0.000000e+00 : f32
    %42 = vector.broadcast %38 : f32 to vector<1x128xf32>
    %43 = vector.broadcast %cst_14 : f32 to vector<1x128xf32>
    %44 = arith.select %41, %42, %43 : vector<1x128xi1>, vector<1x128xf32>
    %c0_15 = arith.constant 0 : index
    %c0_16 = arith.constant 0 : index
    %45 = vector.load %arg4[%c0_15, %c0_16] : memref<1x128xf32, #tpu.memory_space<vmem>>, vector<1x128xf32>
    tpu.vector_store %arg4[%c0_15, %c0_16], %44 {strides = array<i32>} : memref<1x128xf32, #tpu.memory_space<vmem>>, vector<1x128xf32>,
    return
  }
  func.func @transform_0(%arg0: i32) -> (i32, i32) {
    %c0_i32 = arith.constant 0 : i32
    %c0_i32_0 = arith.constant 0 : i32
    return %arg0, %c0_i32 : i32, i32
  }
  func.func @transform_1(%arg0: i32) -> (i32, i32) {
    %c0_i32 = arith.constant 0 : i32
    %c0_i32_0 = arith.constant 0 : i32
    return %arg0, %c0_i32 : i32, i32
  }
  func.func @transform_2(%arg0: i32) -> (i32, i32) {
    %c0_i32 = arith.constant 0 : i32
    %c0_i32_0 = arith.constant 0 : i32
    return %arg0, %c0_i32 : i32, i32
  }
  func.func @transform_3(%arg0: i32) -> (i32, i32) {
    %c0_i32 = arith.constant 0 : i32
    %c0_i32_0 = arith.constant 0 : i32
    return %c0_i32, %arg0 : i32, i32
  }
}

</mosaic_0001>

<llo_original>
// kernel: tpu_custom_call.1
$region0: #{tpu_custom_call.1}
  #allocation0 [shape = 'u32[]', space=smem, size = 0x4, offset = 0x4, fixed_abs, tag = 'smem constant byte address 0x4 - core index']
  #allocation1 [shape = 'u32[144,128]{1,0:T(1,128)}', space=vmem, size = 0x12000, scoped, tag = 'internal scratch']
  %s0 = inlined_call_operand.vmem [shape: f32[8,5], index: 0, kind: input, shape index: {}]
  %s1 = inlined_call_operand.vmem [shape: s32[8,1], index: 1, kind: input, shape index: {}]
  %s2 = inlined_call_operand.vmem [shape: f32[8,1], index: 2, kind: input, shape index: {}]
  %s3 = inlined_call_operand.hbm [shape: f32[1,128], index: 3, kind: output, shape index: {}]
  %s4 = sld [smem:[#allocation0]]
  $region22: #{tpu_custom_call.1} parent=0
    _
  %s6 = ssub.s32 1, %s4
  %s7 = scalar_select 0, %s6, %s4
  $region1: #{tpu_custom_call.1} parent=0
    #allocation2 [shape = 'u8[512]{0}', space=vmem, size = 0x400, scoped, tag = 'output window, operand 0, single buffered']
    #allocation3 [shape = 's32[1]{0}', space=sflag, size = 0x4, scoped, tag = 'scoped memory for tpu_custom_call.1']
    %8 = vsyncpa [#allocation3], 0
    // Predicated region
    $region2: #{tpu_custom_call.1} parent=1 // pred_check
      _
    $region3: #{tpu_custom_call.1} parent=1 // pred_check_branch
      %10 = sbr.rel (0) target = $region5
    $region4: #{tpu_custom_call.1} parent=1 // pred_region
      _
    $region5: #{tpu_custom_call.1} parent=1 // pred_fallthru
      _
    // Predicated region
    $region6: #{tpu_custom_call.1} parent=1 // pred_check
      _
    $region7: #{tpu_custom_call.1} parent=1 // pred_check_branch
      %12 = sbr.rel (0) target = $region9
    $region8: #{tpu_custom_call.1} parent=1 // pred_region
      _
    $region9: #{tpu_custom_call.1} parent=1 // pred_fallthru
      _
    // Predicated region
    $region10: #{tpu_custom_call.1} parent=1 // pred_check
      _
    $region11: #{tpu_custom_call.1} parent=1 // pred_check_branch
      %14 = sbr.rel (0) target = $region13
    $region12: #{tpu_custom_call.1} parent=1 // pred_region
      _
    $region13: #{tpu_custom_call.1} parent=1 // pred_fallthru
      _
    %v15 = vld [vmem:[%s0] sm:$0xff]
    %v16 = vld [vmem:[%s1] sm:$0xff]
    %v17 = vld [vmem:[%s2] sm:$0xff]
    %v18 = vlaneseq
    %v19 = vand.u32 %v18, 127
    %20 = vset.pattern.permute.xlu0 0
    %21 = vperm.xlu0 %20, %v16
    %v22 = vpop.permute.xlu0 %21
    %vm23 = vcmp.eq.s32.totalorder %v19, %v22
    %vm24 = vcmask 39936
    %v25 = vsel %vm24, %v15, -inf
    %26 = vmax.xlane.f32.xlu0 %v25
    %v27 = vpop.xlane.xlu0 %26
    %v28 = vsub.f32 %v15, %v27
    %v29 = vmul.f32 %v28, 1.442695
    %v30 = vpow.pop %v29
    %v31 = vsel %vm24, %v30, 0.0
    %32 = vadd.xlane.f32.xlu0 %v31
    %v33 = vpop.xlane.xlu0 %32
    %v34 = vsel %vm23, %v30, 0.0
    %v35 = vsel %vm24, %v34, 0.0
    %36 = vadd.xlane.f32.xlu0 %v35
    %v37 = vpop.xlane.xlu0 %36
    %v38 = vrcp.pop %v33
    %v39 = vmul.f32 %v37, %v38
    %v40 = vadd.f32 %v39, 1e-05
    %v41 = vlog2.pop %v40
    %v42 = vmul.f32 %v41, 0.6931472
    %v43 = vsub.f32 1.0, %v40
    %v44 = vsub.f32 0.0, %v17
    %v45 = vmul.f32 %v44, %v43
    %v46 = vmul.f32 %v45, %v42
    %v47 = vlaneseq
    %v48 = vshrl.u32 %v47, 7
    %s49 = smul.u32 0, 8
    %v50 = vstv %s49
    %v51 = vadd.s32 %v48, %v50
    %vm52 = vcmp.lt.s32.totalorder %v51, 8
    %v53 = vsel %vm52, %v46, 0.0
    %vm54 = vcmask 7168
    %v55 = vsel %vm54, %v53, 0.0
    %56 = vadd.xlane.f32.xlu0 %v55
    %v57 = vpop.xlane.xlu0 %56
    %v58 = vrot.slane %v57, 4
    %v59 = vadd.f32 %v57, %v58
    %v60 = vrot.slane %v59, 2
    %v61 = vadd.f32 %v59, %v60
    %v62 = vrot.slane %v61, 1
    %v63 = vadd.f32 %v61, %v62
    %s64 = vtos %v63
    %vm65 = vcmp.eq.s32.totalorder %v19, 0
    %v66 = vstv %s64
    %v67 = vsel %vm65, %v66, 0.0
    %68 = vst [vmem:[#allocation2] sm:$0x1] %v67
    // Predicated region
    $region14: #{tpu_custom_call.1} parent=1 // pred_check
      _
    $region15: #{tpu_custom_call.1} parent=1 // pred_check_branch
      %70 = sbr.rel (0) target = $region17
    $region16: #{tpu_custom_call.1} parent=1 // pred_region
      %s72 = ssub.s32 16, 16
      %73 = vsyncadd [#allocation3], %s72
      %s75 = sshll.u32 [#allocation2], 4
      %s76 = int_to_ptr.vmem [resolvable:$true] %s75
      %78 = dma.vmem_to_hbm [thread:$0]  %s76, 16, %s3, [#allocation3]
    $region17: #{tpu_custom_call.1} parent=1 // pred_fallthru
      _
    // Predicated region
    $region18: #{tpu_custom_call.1} parent=1 // pred_check
      _
    $region19: #{tpu_custom_call.1} parent=1 // pred_check_branch
      %80 = sbr.rel (0) target = $region21
    $region20: #{tpu_custom_call.1} parent=1 // pred_region
      %81 = dma.done [#allocation3], 16
    $region21: #{tpu_custom_call.1} parent=1 // pred_fallthru
      _
    %82 = vsyncpa [#allocation3], 1

</llo_original>
